<compile_context>
chip_gen: v7x
topology: tpu7x:2x2x1
jax: 0.10.0
libtpu: 0.0.40
codegen_flags: <defaults>
</compile_context>

<pallas_src>
import jax
import jax.numpy as jnp
from jax.experimental import pallas as pl
from jax.experimental.pallas import tpu as pltpu

_NEG_SLOPE = 0.01  # nn.LeakyReLU default
_BN_EPS = 1e-5     # nn.BatchNorm1d default


# ----------------------------------------------------------------------------
# Kernel: fused conv1(as matmul)+bias+LeakyReLU + conv2(as matmul)+bias+
#         LeakyReLU + Linear, for one (batch b, spatial tile) of TB samples.
# All tensors are oriented with the sample axis last (lane-dense).
# ----------------------------------------------------------------------------
def _disc_kernel(x_ref, a1t_ref, b1_ref, a2t_ref, b2_ref, w3t_ref, b3_ref, o_ref):
    x = x_ref[...].astype(jnp.bfloat16)                                  # (M, TB)

    # Conv1d(1->F, k=3) as MXU matmul; BN scale pre-folded into a1t.
    h = jnp.dot(a1t_ref[...], x, preferred_element_type=jnp.float32)     # (P1, TB)
    h = h + b1_ref[...]                                                   # (P1, 1) bcast
    h = jnp.where(h >= 0.0, h, _NEG_SLOPE * h)

    # Conv1d(F->2F, k=3) as MXU matmul; BN scale pre-folded into a2t.
    h = jnp.dot(a2t_ref[...], h.astype(jnp.bfloat16),
                preferred_element_type=jnp.float32)                       # (P2, TB)
    h = h + b2_ref[...]
    h = jnp.where(h >= 0.0, h, _NEG_SLOPE * h)

    # Flatten is implicit (rows ordered [channel*L + pos]); final Linear.
    out = jnp.dot(w3t_ref[...], h.astype(jnp.bfloat16),
                  preferred_element_type=jnp.float32) + b3_ref[...]       # (D, TB)
    o_ref[...] = out.astype(o_ref.dtype)


# ----------------------------------------------------------------------------
# Host-side constant folding helpers (plain JAX, tiny tensors).
# ----------------------------------------------------------------------------
def _round_up(n: int, m: int) -> int:
    return ((n + m - 1) // m) * m


def _conv1d_as_matrix(w: jax.Array, in_len: int) -> jax.Array:
    """Unroll a VALID 1D conv with weights (Cout, Cin, K) into a dense matrix
    (Cin*in_len, Cout*out_len) such that flat_out = flat_in @ matrix, with
    flat layouts [cin*in_len + pos] / [cout*out_len + pos] (PyTorch order)."""
    c_out, c_in, k = w.shape
    out_len = in_len - k + 1
    m_idx = jnp.arange(in_len)[:, None, None]
    k_idx = jnp.arange(k)[None, :, None]
    l_idx = jnp.arange(out_len)[None, None, :]
    sel = (m_idx == l_idx + k_idx).astype(w.dtype)            # (in_len, K, out_len)
    mat = jnp.einsum('mkl,oik->imol', sel, w)                 # (Cin, in_len, Cout, out_len)
    return mat.reshape(c_in * in_len, c_out * out_len)


def _pad2d(x: jax.Array, rows: int, cols: int) -> jax.Array:
    return jnp.pad(x, ((0, rows - x.shape[0]), (0, cols - x.shape[1])))


def _bn_fold(gamma, beta, mean, var, eps=_BN_EPS):
    scale = gamma / jnp.sqrt(var + eps)
    bias = beta - mean * scale
    return scale, bias


# ----------------------------------------------------------------------------
# Wrapper: ConvDomainDiscriminator.forward
# ----------------------------------------------------------------------------
def conv_domain_discriminator_forward(X, params, *, n_domains: int, tile_hw: int = 1024):
    assert tile_hw % 128 == 0, "tile_hw must be a multiple of 128 (lane-dense)"
    B, M, H, W = X.shape
    HW = H * W
    N = B * HW
    F = params['w1'].shape[0]
    C2 = params['w2'].shape[0]          # 2F
    L1 = M - 2
    L2 = M - 4

    # Constant folding: conv -> matmul matrices; eval-mode BN scale folded
    # into the matrices (per output column), bias kept separate.
    a1 = _conv1d_as_matrix(params['w1'], M)        # (M,      F*L1)
    a2 = _conv1d_as_matrix(params['w2'], L1)       # (F*L1, C2*L2)
    s1v, b1v = _bn_fold(params['g1'], params['be1'], params['rm1'], params['rv1'])
    s2v, b2v = _bn_fold(params['g2'], params['be2'], params['rm2'], params['rv2'])
    a1 = a1 * jnp.repeat(s1v, L1)[None, :]         # scale per column (channel-major)
    a2 = a2 * jnp.repeat(s2v, L2)[None, :]
    b1c = jnp.repeat(b1v, L1)
    b2c = jnp.repeat(b2v, L2)

    # Pad hidden widths to lane/sublane-dense multiples of 128 with zeros
    # (padded channels stay exactly zero through bias=0 / LeakyReLU / zero
    # weight rows, so they never influence valid outputs).
    P1 = _round_up(F * L1, 128)
    P2 = _round_up(C2 * L2, 128)
    a1t = _pad2d(a1, M, P1).T.astype(jnp.bfloat16)                       # (P1, M)
    a2t = _pad2d(a2, P1, P2).T.astype(jnp.bfloat16)                      # (P2, P1)
    w3t = _pad2d(params['wlin'], n_domains, P2).astype(jnp.bfloat16)     # (D,  P2)
    b1 = jnp.pad(b1c, (0, P1 - F * L1)).reshape(P1, 1).astype(jnp.float32)
    b2 = jnp.pad(b2c, (0, P2 - C2 * L2)).reshape(P2, 1).astype(jnp.float32)
    b3 = params['blin'].reshape(n_domains, 1).astype(jnp.float32)

    # Transposed orientation: (B, M, H*W) is a FREE view of the NCHW input
    # (no XLA relayout); the sample axis sits on lanes in every kernel block.
    x3d = X.reshape(B, M, HW)

    # Spatial tile: full extent if small, otherwise a multiple of 128.
    TB = HW if HW <= tile_hw else tile_hw
    n_hw = -(-HW // TB)
    # Keep total grid length >= 2 so v7x can shard across both TensorCores
    # (no effect on v5e/v6e which have a single TC).
    if B * n_hw < 2 and HW >= 256:
        TB = _round_up(-(-HW // 2), 128)
        n_hw = -(-HW // TB)
    grid = (B, n_hw)

    itemsize = X.dtype.itemsize
    flops = 2 * N * (M * P1 + P1 * P2 + P2 * n_domains)
    bytes_accessed = (N * M * itemsize + N * n_domains * itemsize
                      + 2 * (P1 * M + P2 * P1 + n_domains * P2)
                      + 4 * (P1 + P2 + n_domains))

    out3d = pl.pallas_call(
        _disc_kernel,
        out_shape=jax.ShapeDtypeStruct((B, n_domains, HW), X.dtype),
        grid_spec=pltpu.PrefetchScalarGridSpec(
            num_scalar_prefetch=0,
            grid=grid,
            in_specs=[
                pl.BlockSpec((None, M, TB), lambda b, j: (b, 0, j)),   # activations (tiled)
                pl.BlockSpec((P1, M), lambda b, j: (0, 0)),            # conv1 matrix^T (resident)
                pl.BlockSpec((P1, 1), lambda b, j: (0, 0)),            # bn1 bias
                pl.BlockSpec((P2, P1), lambda b, j: (0, 0)),           # conv2 matrix^T (resident)
                pl.BlockSpec((P2, 1), lambda b, j: (0, 0)),            # bn2 bias
                pl.BlockSpec((n_domains, P2), lambda b, j: (0, 0)),    # linear weight (resident)
                pl.BlockSpec((n_domains, 1), lambda b, j: (0, 0)),     # linear bias
            ],
            out_specs=pl.BlockSpec((None, n_domains, TB), lambda b, j: (b, 0, j)),
        ),
        compiler_params=pltpu.CompilerParams(
            dimension_semantics=("parallel", "parallel"),
        ),
        cost_estimate=pl.CostEstimate(flops=flops, transcendentals=0,
                                      bytes_accessed=bytes_accessed),
    )(x3d, a1t, b1, a2t, b2, w3t, b3)

    # Free reshape back to (B, n_domains, H, W); matches the PyTorch
    # view(B,H,W,D).permute(0,3,1,2) sample ordering (hw = h*W + w).
    return out3d.reshape(B, n_domains, H, W)


# ----------------------------------------------------------------------------
# Pure-JAX reference (independent path: direct convolutions, full f32).
# ----------------------------------------------------------------------------
def _conv1d_valid(x, w):
    # x: (N, Cin, L), w: (Cout, Cin, K) -> (N, Cout, L-K+1)
    K = w.shape[-1]
    Lout = x.shape[-1] - K + 1
    out = 0.0
    for kk in range(K):
        out = out + jnp.einsum('ncl,oc->nol', x[:, :, kk:kk + Lout], w[:, :, kk])
    return out


def reference_forward(X, p, *, n_domains: int):
    B, M, H, W = X.shape
    x = jnp.transpose(X, (0, 2, 3, 1)).reshape(B * H * W, M)[:, None, :]
    y = _conv1d_valid(x, p['w1'])
    y = (y - p['rm1'][None, :, None]) / jnp.sqrt(p['rv1'] + _BN_EPS)[None, :, None]
    y = y * p['g1'][None, :, None] + p['be1'][None, :, None]
    y = jnp.where(y >= 0, y, _NEG_SLOPE * y)
    y = _conv1d_valid(y, p['w2'])
    y = (y - p['rm2'][None, :, None]) / jnp.sqrt(p['rv2'] + _BN_EPS)[None, :, None]
    y = y * p['g2'][None, :, None] + p['be2'][None, :, None]
    y = jnp.where(y >= 0, y, _NEG_SLOPE * y)
    y = y.reshape(y.shape[0], -1)
    y = y @ p['wlin'].T + p['blin']
    return jnp.transpose(y.reshape(B, H, W, n_domains), (0, 3, 1, 2))


if __name__ == "__main__":
    # Small deterministic example consistent with the module defaults:
    # n_materials=16, n_features=8, n_domains=2; batch=2, height=width=8.
    B, M, H, W = 2, 16, 8, 8
    F, D = 8, 2
    key = jax.random.PRNGKey(0)
    ks = jax.random.split(key, 10)

    X = jax.random.normal(ks[0], (B, M, H, W), dtype=jnp.float32)
    params = dict(
        w1=jax.random.normal(ks[1], (F, 1, 3), jnp.float32) * 0.4,
        w2=jax.random.normal(ks[2], (2 * F, F, 3), jnp.float32) * 0.15,
        g1=1.0 + 0.1 * jax.random.normal(ks[3], (F,), jnp.float32),
        be1=0.1 * jax.random.normal(ks[4], (F,), jnp.float32),
        rm1=0.1 * jax.random.normal(ks[5], (F,), jnp.float32),
        rv1=1.0 + 0.1 * jax.random.uniform(ks[5], (F,), jnp.float32),
        g2=1.0 + 0.1 * jax.random.normal(ks[6], (2 * F,), jnp.float32),
        be2=0.1 * jax.random.normal(ks[7], (2 * F,), jnp.float32),
        rm2=0.1 * jax.random.normal(ks[8], (2 * F,), jnp.float32),
        rv2=1.0 + 0.1 * jax.random.uniform(ks[8], (2 * F,), jnp.float32),
        wlin=jax.random.normal(ks[9], (D, (M - 4) * 2 * F), jnp.float32) * 0.05,
        blin=0.05 * jax.random.normal(ks[9], (D,), jnp.float32),
    )

    y = conv_domain_discriminator_forward(X, params, n_domains=D)
    y = jax.block_until_ready(y)

    y_ref = reference_forward(X, params, n_domains=D)
    assert y.shape == (B, D, H, W), f"bad shape {y.shape}"
    assert y.dtype == X.dtype
    err = jnp.max(jnp.abs(y - y_ref))
    # Tolerance loosened vs. the f32-operand version: matmul operands are bf16
    # (f32 accumulation / f32 elementwise), per the performance review.
    assert jnp.allclose(y, y_ref, atol=5e-2, rtol=5e-2), f"max abs err {err}"
    print("KERNEL_OK")
</pallas_src>

<mosaic_0001>
module attributes {stable_mosaic.version = 11 : i64} {
  func.func @_disc_kernel(%arg0: i32, %arg1: i32, %arg2: memref<1x16x64xf32, #tpu.memory_space<vmem>>, %arg3: memref<128x16xbf16, #tpu.memory_space<vmem>>, %arg4: memref<128x1xf32, #tpu.memory_space<vmem>>, %arg5: memref<256x128xbf16, #tpu.memory_space<vmem>>, %arg6: memref<256x1xf32, #tpu.memory_space<vmem>>, %arg7: memref<2x256xbf16, #tpu.memory_space<vmem>>, %arg8: memref<2x1xf32, #tpu.memory_space<vmem>>, %arg9: memref<1x2x64xf32, #tpu.memory_space<vmem>>) attributes {dimension_semantics = [#tpu.dimension_semantics<parallel>, #tpu.dimension_semantics<parallel>], iteration_bounds = array<i64: 2, 1>, scalar_prefetch = 0 : i64, scratch_operands = 0 : i64, tpu.core_type = #tpu.core_type<tc>, window_params = [{transform_indices = @transform_0, window_bounds = array<i64: 1, 16, 64>}, {pipeline_mode = #tpu.pipeline_mode<synchronous>, transform_indices = @transform_1, window_bounds = array<i64: 128, 16>}, {pipeline_mode = #tpu.pipeline_mode<synchronous>, transform_indices = @transform_2, window_bounds = array<i64: 128, 1>}, {pipeline_mode = #tpu.pipeline_mode<synchronous>, transform_indices = @transform_3, window_bounds = array<i64: 256, 128>}, {pipeline_mode = #tpu.pipeline_mode<synchronous>, transform_indices = @transform_4, window_bounds = array<i64: 256, 1>}, {pipeline_mode = #tpu.pipeline_mode<synchronous>, transform_indices = @transform_5, window_bounds = array<i64: 2, 256>}, {pipeline_mode = #tpu.pipeline_mode<synchronous>, transform_indices = @transform_6, window_bounds = array<i64: 2, 1>}, {transform_indices = @transform_7, window_bounds = array<i64: 1, 2, 64>}]} {
    %c0 = arith.constant 0 : index
    %c0_0 = arith.constant 0 : index
    %c0_1 = arith.constant 0 : index
    %0 = vector.load %arg2[%c0, %c0_0, %c0_1] : memref<1x16x64xf32, #tpu.memory_space<vmem>>, vector<1x16x64xf32>
    %1 = vector.shape_cast %0 : vector<1x16x64xf32> to vector<16x64xf32>
    %2 = arith.truncf %1 : vector<16x64xf32> to vector<16x64xbf16>
    %c0_2 = arith.constant 0 : index
    %c0_3 = arith.constant 0 : index
    %3 = vector.load %arg3[%c0_2, %c0_3] : memref<128x16xbf16, #tpu.memory_space<vmem>>, vector<128x16xbf16>
    %cst = arith.constant dense<0.000000e+00> : vector<128x64xf32>
    %4 = tpu.matmul %3, %2, %cst {dimension_numbers = #tpu.dot_dimension_numbers<[1], [0], [0], [1], [0, 0, 1, 1], [], []>} : vector<128x16xbf16>, vector<16x64xbf16>, vector<128x64xf32> -> vector<128x64xf32>
    %c0_4 = arith.constant 0 : index
    %c0_5 = arith.constant 0 : index
    %5 = vector.load %arg4[%c0_4, %c0_5] : memref<128x1xf32, #tpu.memory_space<vmem>>, vector<128x1xf32>
    %6 = vector.broadcast %5 : vector<128x1xf32> to vector<128x64xf32>
    %7 = arith.addf %4, %6 : vector<128x64xf32>
    %cst_6 = arith.constant 0.000000e+00 : f32
    %8 = vector.broadcast %cst_6 : f32 to vector<128x64xf32>
    %9 = arith.cmpf oge, %7, %8 : vector<128x64xf32>
    %cst_7 = arith.constant 0.00999999977 : f32
    %10 = vector.broadcast %cst_7 : f32 to vector<128x64xf32>
    %11 = arith.mulf %10, %7 : vector<128x64xf32>
    %12 = arith.select %9, %7, %11 : vector<128x64xi1>, vector<128x64xf32>
    %c0_8 = arith.constant 0 : index
    %c0_9 = arith.constant 0 : index
    %13 = vector.load %arg5[%c0_8, %c0_9] : memref<256x128xbf16, #tpu.memory_space<vmem>>, vector<256x128xbf16>
    %14 = arith.truncf %12 : vector<128x64xf32> to vector<128x64xbf16>
    %cst_10 = arith.constant dense<0.000000e+00> : vector<256x64xf32>
    %15 = tpu.matmul %13, %14, %cst_10 {dimension_numbers = #tpu.dot_dimension_numbers<[1], [0], [0], [1], [0, 0, 1, 1], [], []>} : vector<256x128xbf16>, vector<128x64xbf16>, vector<256x64xf32> -> vector<256x64xf32>
    %c0_11 = arith.constant 0 : index
    %c0_12 = arith.constant 0 : index
    %16 = vector.load %arg6[%c0_11, %c0_12] : memref<256x1xf32, #tpu.memory_space<vmem>>, vector<256x1xf32>
    %17 = vector.broadcast %16 : vector<256x1xf32> to vector<256x64xf32>
    %18 = arith.addf %15, %17 : vector<256x64xf32>
    %cst_13 = arith.constant 0.000000e+00 : f32
    %19 = vector.broadcast %cst_13 : f32 to vector<256x64xf32>
    %20 = arith.cmpf oge, %18, %19 : vector<256x64xf32>
    %cst_14 = arith.constant 0.00999999977 : f32
    %21 = vector.broadcast %cst_14 : f32 to vector<256x64xf32>
    %22 = arith.mulf %21, %18 : vector<256x64xf32>
    %23 = arith.select %20, %18, %22 : vector<256x64xi1>, vector<256x64xf32>
    %c0_15 = arith.constant 0 : index
    %c0_16 = arith.constant 0 : index
    %24 = vector.load %arg7[%c0_15, %c0_16] : memref<2x256xbf16, #tpu.memory_space<vmem>>, vector<2x256xbf16>
    %25 = arith.truncf %23 : vector<256x64xf32> to vector<256x64xbf16>
    %cst_17 = arith.constant dense<0.000000e+00> : vector<2x64xf32>
    %26 = tpu.matmul %24, %25, %cst_17 {dimension_numbers = #tpu.dot_dimension_numbers<[1], [0], [0], [1], [0, 0, 1, 1], [], []>} : vector<2x256xbf16>, vector<256x64xbf16>, vector<2x64xf32> -> vector<2x64xf32>
    %c0_18 = arith.constant 0 : index
    %c0_19 = arith.constant 0 : index
    %27 = vector.load %arg8[%c0_18, %c0_19] : memref<2x1xf32, #tpu.memory_space<vmem>>, vector<2x1xf32>
    %28 = vector.broadcast %27 : vector<2x1xf32> to vector<2x64xf32>
    %29 = arith.addf %26, %28 : vector<2x64xf32>
    %c0_20 = arith.constant 0 : index
    %c0_21 = arith.constant 0 : index
    %c0_22 = arith.constant 0 : index
    %30 = vector.load %arg9[%c0_20, %c0_21, %c0_22] : memref<1x2x64xf32, #tpu.memory_space<vmem>>, vector<1x2x64xf32>
    %31 = vector.shape_cast %30 : vector<1x2x64xf32> to vector<2x64xf32>
    %32 = vector.shape_cast %29 : vector<2x64xf32> to vector<1x2x64xf32>
    tpu.vector_store %arg9[%c0_20, %c0_21, %c0_22], %32 {strides = array<i32>} : memref<1x2x64xf32, #tpu.memory_space<vmem>>, vector<1x2x64xf32>,
    return
  }
  func.func @transform_0(%arg0: i32, %arg1: i32) -> (i32, i32, i32) {
    %c0_i32 = arith.constant 0 : i32
    %c0_i32_0 = arith.constant 0 : i32
    return %arg0, %c0_i32, %arg1 : i32, i32, i32
  }
  func.func @transform_1(%arg0: i32, %arg1: i32) -> (i32, i32) {
    %c0_i32 = arith.constant 0 : i32
    %c0_i32_0 = arith.constant 0 : i32
    %c0_i32_1 = arith.constant 0 : i32
    return %c0_i32, %c0_i32_0 : i32, i32
  }
  func.func @transform_2(%arg0: i32, %arg1: i32) -> (i32, i32) {
    %c0_i32 = arith.constant 0 : i32
    %c0_i32_0 = arith.constant 0 : i32
    %c0_i32_1 = arith.constant 0 : i32
    return %c0_i32, %c0_i32_0 : i32, i32
  }
  func.func @transform_3(%arg0: i32, %arg1: i32) -> (i32, i32) {
    %c0_i32 = arith.constant 0 : i32
    %c0_i32_0 = arith.constant 0 : i32
    %c0_i32_1 = arith.constant 0 : i32
    return %c0_i32, %c0_i32_0 : i32, i32
  }
  func.func @transform_4(%arg0: i32, %arg1: i32) -> (i32, i32) {
    %c0_i32 = arith.constant 0 : i32
    %c0_i32_0 = arith.constant 0 : i32
    %c0_i32_1 = arith.constant 0 : i32
    return %c0_i32, %c0_i32_0 : i32, i32
  }
  func.func @transform_5(%arg0: i32, %arg1: i32) -> (i32, i32) {
    %c0_i32 = arith.constant 0 : i32
    %c0_i32_0 = arith.constant 0 : i32
    %c0_i32_1 = arith.constant 0 : i32
    return %c0_i32, %c0_i32_0 : i32, i32
  }
  func.func @transform_6(%arg0: i32, %arg1: i32) -> (i32, i32) {
    %c0_i32 = arith.constant 0 : i32
    %c0_i32_0 = arith.constant 0 : i32
    %c0_i32_1 = arith.constant 0 : i32
    return %c0_i32, %c0_i32_0 : i32, i32
  }
  func.func @transform_7(%arg0: i32, %arg1: i32) -> (i32, i32, i32) {
    %c0_i32 = arith.constant 0 : i32
    %c0_i32_0 = arith.constant 0 : i32
    return %arg0, %c0_i32, %arg1 : i32, i32, i32
  }
}

</mosaic_0001>

<llo_original>
// kernel: tpu_custom_call.1
$region0: #{tpu_custom_call.1}
  #allocation0 [shape = 'u32[]', space=smem, size = 0x4, offset = 0x4, fixed_abs, tag = 'smem constant byte address 0x4 - core index']
  #allocation1 [shape = 'u32[144,128]{1,0:T(1,128)}', space=vmem, size = 0x12000, scoped, tag = 'internal scratch']
  %s0 = inlined_call_operand.vmem [shape: f32[2,16,64], index: 0, kind: input, shape index: {}]
  %s1 = inlined_call_operand.vmem [shape: bf16[128,16], index: 1, kind: input, shape index: {}]
  %s2 = inlined_call_operand.vmem [shape: f32[128,1], index: 2, kind: input, shape index: {}]
  %s3 = inlined_call_operand.vmem [shape: bf16[256,128], index: 3, kind: input, shape index: {}]
  %s4 = inlined_call_operand.vmem [shape: f32[256,1], index: 4, kind: input, shape index: {}]
  %s5 = inlined_call_operand.vmem [shape: bf16[2,256], index: 5, kind: input, shape index: {}]
  %s6 = inlined_call_operand.vmem [shape: f32[2,1], index: 6, kind: input, shape index: {}]
  %s7 = inlined_call_operand.hbm [shape: f32[2,2,64], index: 7, kind: output, shape index: {}]
  %s8 = sld [smem:[#allocation0]]
  $region61: #{tpu_custom_call.1} parent=0
    _
  %s10 = ssub.s32 1, %s8
  %s11 = scalar_select 0, %s10, %s8
  $region1: #{tpu_custom_call.1} parent=0
    #allocation2 [shape = 'u8[2048]{0}', space=vmem, size = 0x800, scoped, tag = 'output window, operand 0']
    #allocation3 [shape = 's32[2]{0}', space=sflag, size = 0x8, scoped, tag = 'scoped memory for tpu_custom_call.1']
    %12 = vsyncpa [#allocation3], 0
    %s13 = scalar_lea.sflag [#allocation3], 1
    %14 = vsyncpa %s13, 0
    loop: start=0, step=1, limit=4
    $region2: #{tpu_custom_call.1} parent=1 // loop_pre_header
      _
    $region3: #{tpu_custom_call.1} parent=1 // loop_header
      %s16 = sphi 0, %s20
      %p17 = scmp.ge.s32.totalorder %s16, 4
      %s23 = sphi 0, %s35
      %s24 = sphi 0, %s31
      %s25 = sphi 0, %s23
      %s26 = sphi 0, %s24
      %s27 = sphi 0, %s25
      %s28 = sphi 0, %s26
      %s40 = sphi 0, %s42
      %s43 = sphi 0, %s40
      %s44 = sphi 0, %s43
      %s60 = sphi 0, %s44
      %s64 = sphi 0, %s64
      %s66 = sphi 0, %s64
      %s67 = sphi 0, %s66
      %s81 = sphi 0, %s67
      %s85 = sphi 0, %s85
      %s87 = sphi 0, %s85
      %s88 = sphi 0, %s87
      %s102 = sphi 0, %s88
      %s106 = sphi 0, %s106
      %s108 = sphi 0, %s106
      %s109 = sphi 0, %s108
      %s123 = sphi 0, %s109
      %s127 = sphi 0, %s127
      %s129 = sphi 0, %s127
      %s130 = sphi 0, %s129
      %s144 = sphi 0, %s130
      %s148 = sphi 0, %s148
      %s150 = sphi 0, %s148
      %s151 = sphi 0, %s150
      %s165 = sphi 0, %s151
      %s169 = sphi 0, %s169
      %s171 = sphi 0, %s169
      %s172 = sphi 0, %s171
      %s186 = sphi 0, %s172
      %s194 = sphi 0, %s196
      %s197 = sphi 0, %s194
      %s198 = sphi 0, %s197
      %s214 = sphi 0, %s198
    $region4: #{tpu_custom_call.1} parent=1 // loop_header_branch
      %19 = sbr.rel (%p17) target = $region8
    $region5: #{tpu_custom_call.1} parent=1 // loop_body
      %s21 = ssub.s32 %s16, 1
      %s22 = ssub.s32 %s16, 2
      %s29 = sadd.s32 1, %s24
      %p30 = scmp.ge.s32.totalorder %s29, 1
      %s31 = scalar_select %p30, 0, %s29
      %s32 = sadd.s32 1, %s23
      %s33 = scalar_select %p30, %s32, %s23
      %p34 = scmp.ge.s32.totalorder %s33, 2
      %s35 = scalar_select %p34, 0, %s33
      %s36 = ssub.s32 %s23, %s35
      %s37 = ssub.s32 %s24, %s31
      %s38 = sor.u32 %s36, %s37
      %p39 = scmp.eq.s32.totalorder %s38, 0
      %s41 = sadd.s32 %s40, 1
      %s42 = scalar_select %p39, %s40, %s41
      %p45 = pneg %p39
      %p46 = scmp.eq.s32.totalorder %s16, 1
      %p47 = por %p45, %p46
      %p48 = scmp.ne.s32.totalorder %s40, %s43
      %p49 = scmp.eq.s32.totalorder %s16, 0
      %p50 = por %p48, %p49
      %p51 = scmp.ne.s32.totalorder %s40, %s43
      %p52 = scmp.eq.s32.totalorder %s21, 1
      %p53 = por %p51, %p52
      %p54 = scmp.ne.s32.totalorder %s43, %s44
      %p55 = scmp.eq.s32.totalorder %s21, 0
      %p56 = por %p54, %p55
      %p57 = scmp.ne.s32.totalorder %s43, %s44
      %p58 = scmp.eq.s32.totalorder %s22, 1
      %p59 = por %p57, %p58
      %p61 = scmp.ne.s32.totalorder %s44, %s60
      %p62 = scmp.eq.s32.totalorder %s22, 0
      %p63 = por %p61, %p62
      %s65 = sadd.s32 %s64, 1
      %p68 = scmp.eq.s32.totalorder %s16, 1
      %p69 = scmp.ne.s32.totalorder %s64, %s66
      %p70 = scmp.eq.s32.totalorder %s16, 0
      %p71 = por %p69, %p70
      %p72 = scmp.ne.s32.totalorder %s64, %s66
      %p73 = scmp.eq.s32.totalorder %s21, 1
      %p74 = por %p72, %p73
      %p75 = scmp.ne.s32.totalorder %s66, %s67
      %p76 = scmp.eq.s32.totalorder %s21, 0
      %p77 = por %p75, %p76
      %p78 = scmp.ne.s32.totalorder %s66, %s67
      %p79 = scmp.eq.s32.totalorder %s22, 1
      %p80 = por %p78, %p79
      %p82 = scmp.ne.s32.totalorder %s67, %s81
      %p83 = scmp.eq.s32.totalorder %s22, 0
      %p84 = por %p82, %p83
      %s86 = sadd.s32 %s85, 1
      %p89 = scmp.eq.s32.totalorder %s16, 1
      %p90 = scmp.ne.s32.totalorder %s85, %s87
      %p91 = scmp.eq.s32.totalorder %s16, 0
      %p92 = por %p90, %p91
      %p93 = scmp.ne.s32.totalorder %s85, %s87
      %p94 = scmp.eq.s32.totalorder %s21, 1
      %p95 = por %p93, %p94
      %p96 = scmp.ne.s32.totalorder %s87, %s88
      %p97 = scmp.eq.s32.totalorder %s21, 0
      %p98 = por %p96, %p97
      %p99 = scmp.ne.s32.totalorder %s87, %s88
      %p100 = scmp.eq.s32.totalorder %s22, 1
      %p101 = por %p99, %p100
      %p103 = scmp.ne.s32.totalorder %s88, %s102
      %p104 = scmp.eq.s32.totalorder %s22, 0
      %p105 = por %p103, %p104
      %s107 = sadd.s32 %s106, 1
      %p110 = scmp.eq.s32.totalorder %s16, 1
      %p111 = scmp.ne.s32.totalorder %s106, %s108
      %p112 = scmp.eq.s32.totalorder %s16, 0
      %p113 = por %p111, %p112
      %p114 = scmp.ne.s32.totalorder %s106, %s108
      %p115 = scmp.eq.s32.totalorder %s21, 1
      %p116 = por %p114, %p115
      %p117 = scmp.ne.s32.totalorder %s108, %s109
      %p118 = scmp.eq.s32.totalorder %s21, 0
      %p119 = por %p117, %p118
      %p120 = scmp.ne.s32.totalorder %s108, %s109
      %p121 = scmp.eq.s32.totalorder %s22, 1
      %p122 = por %p120, %p121
      %p124 = scmp.ne.s32.totalorder %s109, %s123
      %p125 = scmp.eq.s32.totalorder %s22, 0
      %p126 = por %p124, %p125
      %s128 = sadd.s32 %s127, 1
      %p131 = scmp.eq.s32.totalorder %s16, 1
      %p132 = scmp.ne.s32.totalorder %s127, %s129
      %p133 = scmp.eq.s32.totalorder %s16, 0
      %p134 = por %p132, %p133
      %p135 = scmp.ne.s32.totalorder %s127, %s129
      %p136 = scmp.eq.s32.totalorder %s21, 1
      %p137 = por %p135, %p136
      %p138 = scmp.ne.s32.totalorder %s129, %s130
      %p139 = scmp.eq.s32.totalorder %s21, 0
      %p140 = por %p138, %p139
      %p141 = scmp.ne.s32.totalorder %s129, %s130
      %p142 = scmp.eq.s32.totalorder %s22, 1
      %p143 = por %p141, %p142
      %p145 = scmp.ne.s32.totalorder %s130, %s144
      %p146 = scmp.eq.s32.totalorder %s22, 0
      %p147 = por %p145, %p146
      %s149 = sadd.s32 %s148, 1
      %p152 = scmp.eq.s32.totalorder %s16, 1
      %p153 = scmp.ne.s32.totalorder %s148, %s150
      %p154 = scmp.eq.s32.totalorder %s16, 0
      %p155 = por %p153, %p154
      %p156 = scmp.ne.s32.totalorder %s148, %s150
      %p157 = scmp.eq.s32.totalorder %s21, 1
      %p158 = por %p156, %p157
      %p159 = scmp.ne.s32.totalorder %s150, %s151
      %p160 = scmp.eq.s32.totalorder %s21, 0
      %p161 = por %p159, %p160
      %p162 = scmp.ne.s32.totalorder %s150, %s151
      %p163 = scmp.eq.s32.totalorder %s22, 1
      %p164 = por %p162, %p163
      %p166 = scmp.ne.s32.totalorder %s151, %s165
      %p167 = scmp.eq.s32.totalorder %s22, 0
      %p168 = por %p166, %p167
      %s170 = sadd.s32 %s169, 1
      %p173 = scmp.eq.s32.totalorder %s16, 1
      %p174 = scmp.ne.s32.totalorder %s169, %s171
      %p175 = scmp.eq.s32.totalorder %s16, 0
      %p176 = por %p174, %p175
      %p177 = scmp.ne.s32.totalorder %s169, %s171
      %p178 = scmp.eq.s32.totalorder %s21, 1
      %p179 = por %p177, %p178
      %p180 = scmp.ne.s32.totalorder %s171, %s172
      %p181 = scmp.eq.s32.totalorder %s21, 0
      %p182 = por %p180, %p181
      %p183 = scmp.ne.s32.totalorder %s171, %s172
      %p184 = scmp.eq.s32.totalorder %s22, 1
      %p185 = por %p183, %p184
      %p187 = scmp.ne.s32.totalorder %s172, %s186
      %p188 = scmp.eq.s32.totalorder %s22, 0
      %p189 = por %p187, %p188
      %s190 = ssub.s32 %s23, %s35
      %s191 = ssub.s32 %s24, %s31
      %s192 = sor.u32 %s190, %s191
      %p193 = scmp.eq.s32.totalorder %s192, 0
      %s195 = sadd.s32 %s194, 1
      %s196 = scalar_select %p193, %s194, %s195
      %p199 = pneg %p193
      %p200 = scmp.eq.s32.totalorder %s16, 1
      %p201 = por %p199, %p200
      %p202 = scmp.ne.s32.totalorder %s194, %s197
      %p203 = scmp.eq.s32.totalorder %s16, 0
      %p204 = por %p202, %p203
      %p205 = scmp.ne.s32.totalorder %s194, %s197
      %p206 = scmp.eq.s32.totalorder %s21, 1
      %p207 = por %p205, %p206
      %p208 = scmp.ne.s32.totalorder %s197, %s198
      %p209 = scmp.eq.s32.totalorder %s21, 0
      %p210 = por %p208, %p209
      %p211 = scmp.ne.s32.totalorder %s197, %s198
      %p212 = scmp.eq.s32.totalorder %s22, 1
      %p213 = por %p211, %p212
      %p215 = scmp.ne.s32.totalorder %s198, %s214
      %p216 = scmp.eq.s32.totalorder %s22, 0
      %p217 = por %p215, %p216
      %p218 = scmp.le.s32.totalorder 1, %s16
      %p219 = scmp.lt.s32.totalorder %s16, 3
      %p220 = pnand %p218, %p219
      %p221 = pneg %p220
      // Predicated region
      $region9: #{tpu_custom_call.1} parent=5 // pred_check
        _
      $region10: #{tpu_custom_call.1} parent=5 // pred_check_branch
        %223 = sbr.rel (%p220) target = $region12
      $region11: #{tpu_custom_call.1} parent=5 // pred_region
        %s224 = ssub.s32 %s16, 1
        // Predicated region
        $region13: #{tpu_custom_call.1} parent=11 // pred_check
          %p225 = pneg %p77
        $region14: #{tpu_custom_call.1} parent=11 // pred_check_branch
          %227 = sbr.rel (%p225) target = $region16
        $region15: #{tpu_custom_call.1} parent=11 // pred_region
          _
        $region16: #{tpu_custom_call.1} parent=11 // pred_fallthru
          _
        // Predicated region
        $region17: #{tpu_custom_call.1} parent=11 // pred_check
          %p228 = pneg %p98
        $region18: #{tpu_custom_call.1} parent=11 // pred_check_branch
          %230 = sbr.rel (%p228) target = $region20
        $region19: #{tpu_custom_call.1} parent=11 // pred_region
          _
        $region20: #{tpu_custom_call.1} parent=11 // pred_fallthru
          _
        // Predicated region
        $region21: #{tpu_custom_call.1} parent=11 // pred_check
          %p231 = pneg %p119
        $region22: #{tpu_custom_call.1} parent=11 // pred_check_branch
          %233 = sbr.rel (%p231) target = $region24
        $region23: #{tpu_custom_call.1} parent=11 // pred_region
          _
        $region24: #{tpu_custom_call.1} parent=11 // pred_fallthru
          _
        // Predicated region
        $region25: #{tpu_custom_call.1} parent=11 // pred_check
          %p234 = pneg %p140
        $region26: #{tpu_custom_call.1} parent=11 // pred_check_branch
          %236 = sbr.rel (%p234) target = $region28
        $region27: #{tpu_custom_call.1} parent=11 // pred_region
          _
        $region28: #{tpu_custom_call.1} parent=11 // pred_fallthru
          _
        // Predicated region
        $region29: #{tpu_custom_call.1} parent=11 // pred_check
          %p237 = pneg %p161
        $region30: #{tpu_custom_call.1} parent=11 // pred_check_branch
          %239 = sbr.rel (%p237) target = $region32
        $region31: #{tpu_custom_call.1} parent=11 // pred_region
          _
        $region32: #{tpu_custom_call.1} parent=11 // pred_fallthru
          _
        // Predicated region
        $region33: #{tpu_custom_call.1} parent=11 // pred_check
          %p240 = pneg %p182
        $region34: #{tpu_custom_call.1} parent=11 // pred_check_branch
          %242 = sbr.rel (%p240) target = $region36
        $region35: #{tpu_custom_call.1} parent=11 // pred_region
          _
        $region36: #{tpu_custom_call.1} parent=11 // pred_fallthru
          _
      $region12: #{tpu_custom_call.1} parent=5 // pred_fallthru
        _
      %p243 = scmp.lt.s32.totalorder %s16, 2
      // Predicated region
      $region37: #{tpu_custom_call.1} parent=5 // pred_check
        %p244 = pneg %p243
      $region38: #{tpu_custom_call.1} parent=5 // pred_check_branch
        %246 = sbr.rel (%p244) target = $region40
      $region39: #{tpu_custom_call.1} parent=5 // pred_region
        // Predicated region
        $region41: #{tpu_custom_call.1} parent=39 // pred_check
          %p247 = pneg %p50
        $region42: #{tpu_custom_call.1} parent=39 // pred_check_branch
          %249 = sbr.rel (%p247) target = $region44
        $region43: #{tpu_custom_call.1} parent=39 // pred_region
          %p250 = scmp.lt.s32.totalorder %s23, 1
          %s251 = scalar_select %p250, %s23, 1
          %p252 = scmp.lt.s32.totalorder %s24, 0
          %s253 = scalar_select %p252, %s24, 0
          %s254 = smul.addr %s251, 2
          %s255 = sadd.s32 %s253, %s254
          %s256 = smul.addr %s255, 8
          %s257 = scalar_lea.vmem %s0, %s256
        $region44: #{tpu_custom_call.1} parent=39 // pred_fallthru
          _
      $region40: #{tpu_custom_call.1} parent=5 // pred_fallthru
        _
      %p258 = scmp.le.s32.totalorder 1, %s16
      %p259 = scmp.lt.s32.totalorder %s16, 3
      %p260 = pnand %p258, %p259
      %p261 = pneg %p260
      // Predicated region
      $region45: #{tpu_custom_call.1} parent=5 // pred_check
        _
      $region46: #{tpu_custom_call.1} parent=5 // pred_check_branch
        %263 = sbr.rel (%p260) target = $region48
      $region47: #{tpu_custom_call.1} parent=5 // pred_region
        %s264 = ssub.s32 %s16, 1
        %p265 = scmp.lt.s32.totalorder %s25, 1
        %s266 = scalar_select %p265, %s25, 1
        %p267 = scmp.lt.s32.totalorder %s26, 0
        %s268 = scalar_select %p267, %s26, 0
        %s269 = smul.addr %s266, 2
        %s270 = sadd.s32 %s268, %s269
        %s271 = smul.addr %s270, 8
        %s272 = scalar_lea.vmem %s0, %s271
        %p273 = pneg %p56
        %p274 = pneg %p53
        %p275 = pneg %p77
        %p276 = pneg %p74
        %p277 = pneg %p98
        %p278 = pneg %p95
        %p279 = pneg %p119
        %p280 = pneg %p116
        %p281 = pneg %p140
        %p282 = pneg %p137
        %p283 = pneg %p161
        %p284 = pneg %p158
        %p285 = pneg %p182
        %p286 = pneg %p179
        %p287 = pneg %p210
        %p288 = pneg %p207
        %s289 = sand.u32 %s197, 1
        %s290 = scalar_lea.sflag [#allocation3], %s289
        %s291 = sand.u32 %s197, 1
        %s292 = smul.addr %s291, 2
        %s293 = scalar_lea.vmem [#allocation2], %s292
        %p294 = scmp.lt.s32.totalorder %s25, 1
        %s295 = scalar_select %p294, %s25, 1
        %p296 = scmp.lt.s32.totalorder %s26, 0
        %s297 = scalar_select %p296, %s26, 0
        %s298 = smul.addr %s295, 2
        %s299 = sadd.s32 %s297, %s298
        %s300 = smul.addr %s299, 8
        %s301 = scalar_lea.vmem %s0, %s300
        %v303 = vld [vmem:[%s301] sm:$0xff]
        %v304 = vld [vmem:[%s301 + $0x8] sm:$0xff]
        %v305 = vpack.c.bf16 %v304, %v303
        %v306 = vld [vmem:[%s1] sm:$0xf]
        %v307 = vld [vmem:[%s1 + $0x4] sm:$0xf]
        %v308 = vld [vmem:[%s1 + $0x8] sm:$0xf]
        %v309 = vld [vmem:[%s1 + $0xc] sm:$0xf]
        %v310 = vld [vmem:[%s1 + $0x10] sm:$0xf]
        %v311 = vld [vmem:[%s1 + $0x14] sm:$0xf]
        %v312 = vld [vmem:[%s1 + $0x18] sm:$0xf]
        %v313 = vld [vmem:[%s1 + $0x1c] sm:$0xf]
        %v314 = vld [vmem:[%s1 + $0x20] sm:$0xf]
        %v315 = vld [vmem:[%s1 + $0x24] sm:$0xf]
        %v316 = vld [vmem:[%s1 + $0x28] sm:$0xf]
        %v317 = vld [vmem:[%s1 + $0x2c] sm:$0xf]
        %v318 = vld [vmem:[%s1 + $0x30] sm:$0xf]
        %v319 = vld [vmem:[%s1 + $0x34] sm:$0xf]
        %v320 = vld [vmem:[%s1 + $0x38] sm:$0xf]
        %v321 = vld [vmem:[%s1 + $0x3c] sm:$0xf]
        %v322 = vld [vmem:[%s2] sm:$0xff]
        %v323 = vld [vmem:[%s2 + $0x8] sm:$0xff]
        %v324 = vld [vmem:[%s2 + $0x10] sm:$0xff]
        %v325 = vld [vmem:[%s2 + $0x18] sm:$0xff]
        %v326 = vld [vmem:[%s2 + $0x20] sm:$0xff]
        %v327 = vld [vmem:[%s2 + $0x28] sm:$0xff]
        %v328 = vld [vmem:[%s2 + $0x30] sm:$0xff]
        %v329 = vld [vmem:[%s2 + $0x38] sm:$0xff]
        %v330 = vld [vmem:[%s2 + $0x40] sm:$0xff]
        %v331 = vld [vmem:[%s2 + $0x48] sm:$0xff]
        %v332 = vld [vmem:[%s2 + $0x50] sm:$0xff]
        %v333 = vld [vmem:[%s2 + $0x58] sm:$0xff]
        %v334 = vld [vmem:[%s2 + $0x60] sm:$0xff]
        %v335 = vld [vmem:[%s2 + $0x68] sm:$0xff]
        %v336 = vld [vmem:[%s2 + $0x70] sm:$0xff]
        %v337 = vld [vmem:[%s2 + $0x78] sm:$0xff]
        %339 = vset.pattern.permute.xlu0 0
        %340 = vperm.xlu0 %339, %v322
        %v341 = vpop.permute.xlu0 %340
        %344 = vset.pattern.permute.xlu0 0
        %345 = vperm.xlu0 %344, %v323
        %v346 = vpop.permute.xlu0 %345
        %349 = vset.pattern.permute.xlu0 0
        %350 = vperm.xlu0 %349, %v324
        %v351 = vpop.permute.xlu0 %350
        %354 = vset.pattern.permute.xlu0 0
        %355 = vperm.xlu0 %354, %v325
        %v356 = vpop.permute.xlu0 %355
        %359 = vset.pattern.permute.xlu0 0
        %360 = vperm.xlu0 %359, %v326
        %v361 = vpop.permute.xlu0 %360
        %364 = vset.pattern.permute.xlu0 0
        %365 = vperm.xlu0 %364, %v327
        %v366 = vpop.permute.xlu0 %365
        %369 = vset.pattern.permute.xlu0 0
        %370 = vperm.xlu0 %369, %v328
        %v371 = vpop.permute.xlu0 %370
        %374 = vset.pattern.permute.xlu0 0
        %375 = vperm.xlu0 %374, %v329
        %v376 = vpop.permute.xlu0 %375
        %379 = vset.pattern.permute.xlu0 0
        %380 = vperm.xlu0 %379, %v330
        %v381 = vpop.permute.xlu0 %380
        %384 = vset.pattern.permute.xlu0 0
        %385 = vperm.xlu0 %384, %v331
        %v386 = vpop.permute.xlu0 %385
        %389 = vset.pattern.permute.xlu0 0
        %390 = vperm.xlu0 %389, %v332
        %v391 = vpop.permute.xlu0 %390
        %394 = vset.pattern.permute.xlu0 0
        %395 = vperm.xlu0 %394, %v333
        %v396 = vpop.permute.xlu0 %395
        %399 = vset.pattern.permute.xlu0 0
        %400 = vperm.xlu0 %399, %v334
        %v401 = vpop.permute.xlu0 %400
        %404 = vset.pattern.permute.xlu0 0
        %405 = vperm.xlu0 %404, %v335
        %v406 = vpop.permute.xlu0 %405
        %409 = vset.pattern.permute.xlu0 0
        %410 = vperm.xlu0 %409, %v336
        %v411 = vpop.permute.xlu0 %410
        %414 = vset.pattern.permute.xlu0 0
        %415 = vperm.xlu0 %414, %v337
        %v416 = vpop.permute.xlu0 %415
        %v434 = vunpack.c.l.b16 %v306
        %v435 = vunpack.c.l.b16 %v307
        %v436 = vunpack.c.l.b16 %v308
        %v437 = vunpack.c.l.b16 %v309
        %v438 = vunpack.c.l.b16 %v310
        %v439 = vunpack.c.l.b16 %v311
        %v440 = vunpack.c.l.b16 %v312
        %v441 = vunpack.c.l.b16 %v313
        %v442 = vunpack.c.l.b16 %v314
        %v443 = vunpack.c.l.b16 %v315
        %v444 = vunpack.c.l.b16 %v316
        %v445 = vunpack.c.l.b16 %v317
        %v446 = vunpack.c.l.b16 %v318
        %v447 = vunpack.c.l.b16 %v319
        %v448 = vunpack.c.l.b16 %v320
        %v449 = vunpack.c.l.b16 %v321
        %v450 = vpack.c.b16 %v435, %v434
        %v451 = vpack.c.b16 %v437, %v436
        %v452 = vpack.c.b16 %v439, %v438
        %v453 = vpack.c.b16 %v441, %v440
        %v454 = vpack.c.b16 %v443, %v442
        %v455 = vpack.c.b16 %v445, %v444
        %v456 = vpack.c.b16 %v447, %v446
        %v457 = vpack.c.b16 %v449, %v448
        %vm458 = vcmask 130048
        %v460 = vsel %vm458, %v450, 0
        %v463 = vsel %vm458, %v451, 0
        %v466 = vsel %vm458, %v452, 0
        %v469 = vsel %vm458, %v453, 0
        %v472 = vsel %vm458, %v454, 0
        %v475 = vsel %vm458, %v455, 0
        %v478 = vsel %vm458, %v456, 0
        %v481 = vsel %vm458, %v457, 0
        %483 = vmatprep.subr.bf16.mxu0 0
        %484 = vmatpush1.bf16.msra.mxu0 %v305
        %485 = vmatprep.subr.bf16.mxu0 0
        %486 = vmatpush1.bf16.msra.mxu0 0
        %487 = vmatprep.subr.bf16.mxu0 0
        %488 = vmatpush1.bf16.msra.mxu0 0
        %489 = vmatprep.subr.bf16.mxu0 0
        %490 = vmatpush1.bf16.msra.mxu0 0
        %491 = vmatprep.subr.bf16.mxu0 0
        %492 = vmatpush1.bf16.msra.mxu0 0
        %493 = vmatprep.subr.bf16.mxu0 0
        %494 = vmatpush1.bf16.msra.mxu0 0
        %495 = vmatprep.subr.bf16.mxu0 0
        %496 = vmatpush1.bf16.msra.mxu0 0
        %497 = vmatprep.subr.bf16.mxu0 0
        %498 = vmatpush1.bf16.msra.mxu0 0
        %499 = vmatprep.subr.bf16.mxu0 0
        %500 = vmatpush1.bf16.msra.mxu0 0
        %501 = vmatprep.subr.bf16.mxu0 0
        %502 = vmatpush1.bf16.msra.mxu0 0
        %503 = vmatprep.subr.bf16.mxu0 0
        %504 = vmatpush1.bf16.msra.mxu0 0
        %505 = vmatprep.subr.bf16.mxu0 0
        %506 = vmatpush1.bf16.msra.mxu0 0
        %507 = vmatprep.subr.bf16.mxu0 0
        %508 = vmatpush1.bf16.msra.mxu0 0
        %509 = vmatprep.subr.bf16.mxu0 0
        %510 = vmatpush1.bf16.msra.mxu0 0
        %511 = vmatprep.subr.bf16.mxu0 0
        %512 = vmatpush1.bf16.msra.mxu0 0
        %513 = vmatprep.subr.bf16.mxu0 0
        %514 = vmatpush1.bf16.msra.mxu0 0
        %515 = vmatprep.mubr.bf16.mxu0 0
        %516 = vmatmul.mubr.bf16.gmra.mrb[0].mxu0 %v460
        %v517 = vpop.f32.mrb[0].mxu0
        %v518 = vadd.f32 %v341, %v517
        %v519 = vpop.f32.mrb[0].mxu0
        %v520 = vpop.f32.mrb[0].mxu0
        %v521 = vadd.f32 %v346, %v520
        %v522 = vpop.f32.mrb[0].mxu0
        %523 = vmatprep.mubr.bf16.mxu0 0
        %524 = vmatmul.mubr.bf16.gmra.mrb[0].mxu0 %v463
        %v525 = vpop.f32.mrb[0].mxu0
        %v526 = vadd.f32 %v351, %v525
        %v527 = vpop.f32.mrb[0].mxu0
        %v528 = vpop.f32.mrb[0].mxu0
        %v529 = vadd.f32 %v356, %v528
        %v530 = vpop.f32.mrb[0].mxu0
        %531 = vmatprep.mubr.bf16.mxu0 0
        %532 = vmatmul.mubr.bf16.gmra.mrb[0].mxu0 %v466
        %v533 = vpop.f32.mrb[0].mxu0
        %v534 = vadd.f32 %v361, %v533
        %v535 = vpop.f32.mrb[0].mxu0
        %v536 = vpop.f32.mrb[0].mxu0
        %v537 = vadd.f32 %v366, %v536
        %v538 = vpop.f32.mrb[0].mxu0
        %539 = vmatprep.mubr.bf16.mxu0 0
        %540 = vmatmul.mubr.bf16.gmra.mrb[0].mxu0 %v469
        %v541 = vpop.f32.mrb[0].mxu0
        %v542 = vadd.f32 %v371, %v541
        %v543 = vpop.f32.mrb[0].mxu0
        %v544 = vpop.f32.mrb[0].mxu0
        %v545 = vadd.f32 %v376, %v544
        %v546 = vpop.f32.mrb[0].mxu0
        %547 = vmatprep.mubr.bf16.mxu0 0
        %548 = vmatmul.mubr.bf16.gmra.mrb[0].mxu0 %v472
        %v549 = vpop.f32.mrb[0].mxu0
        %v550 = vadd.f32 %v381, %v549
        %v551 = vpop.f32.mrb[0].mxu0
        %v552 = vpop.f32.mrb[0].mxu0
        %v553 = vadd.f32 %v386, %v552
        %v554 = vpop.f32.mrb[0].mxu0
        %555 = vmatprep.mubr.bf16.mxu0 0
        %556 = vmatmul.mubr.bf16.gmra.mrb[0].mxu0 %v475
        %v557 = vpop.f32.mrb[0].mxu0
        %v558 = vadd.f32 %v391, %v557
        %v559 = vpop.f32.mrb[0].mxu0
        %v560 = vpop.f32.mrb[0].mxu0
        %v561 = vadd.f32 %v396, %v560
        %v562 = vpop.f32.mrb[0].mxu0
        %563 = vmatprep.mubr.bf16.mxu0 0
        %564 = vmatmul.mubr.bf16.gmra.mrb[0].mxu0 %v478
        %v565 = vpop.f32.mrb[0].mxu0
        %v566 = vadd.f32 %v401, %v565
        %v567 = vpop.f32.mrb[0].mxu0
        %v568 = vpop.f32.mrb[0].mxu0
        %v569 = vadd.f32 %v406, %v568
        %v570 = vpop.f32.mrb[0].mxu0
        %571 = vmatprep.mubr.bf16.mxu0 0
        %572 = vmatmul.mubr.bf16.gmra.mrb[0].mxu0 %v481
        %v573 = vpop.f32.mrb[0].mxu0
        %v574 = vadd.f32 %v411, %v573
        %v575 = vpop.f32.mrb[0].mxu0
        %v576 = vpop.f32.mrb[0].mxu0
        %v577 = vadd.f32 %v416, %v576
        %v578 = vpop.f32.mrb[0].mxu0
        %579 = vdwg.mxu0
        %vm580 = vcmp.ge.f32.partialorder %v518, 0.0
        %vm581 = vcmp.ge.f32.partialorder %v521, 0.0
        %vm582 = vcmp.ge.f32.partialorder %v526, 0.0
        %vm583 = vcmp.ge.f32.partialorder %v529, 0.0
        %vm584 = vcmp.ge.f32.partialorder %v534, 0.0
        %vm585 = vcmp.ge.f32.partialorder %v537, 0.0
        %vm586 = vcmp.ge.f32.partialorder %v542, 0.0
        %vm587 = vcmp.ge.f32.partialorder %v545, 0.0
        %vm588 = vcmp.ge.f32.partialorder %v550, 0.0
        %vm589 = vcmp.ge.f32.partialorder %v553, 0.0
        %vm590 = vcmp.ge.f32.partialorder %v558, 0.0
        %vm591 = vcmp.ge.f32.partialorder %v561, 0.0
        %vm592 = vcmp.ge.f32.partialorder %v566, 0.0
        %vm593 = vcmp.ge.f32.partialorder %v569, 0.0
        %vm594 = vcmp.ge.f32.partialorder %v574, 0.0
        %vm595 = vcmp.ge.f32.partialorder %v577, 0.0
        %v596 = vmul.f32 %v518, 0.01
        %v597 = vmul.f32 %v521, 0.01
        %v598 = vmul.f32 %v526, 0.01
        %v599 = vmul.f32 %v529, 0.01
        %v600 = vmul.f32 %v534, 0.01
        %v601 = vmul.f32 %v537, 0.01
        %v602 = vmul.f32 %v542, 0.01
        %v603 = vmul.f32 %v545, 0.01
        %v604 = vmul.f32 %v550, 0.01
        %v605 = vmul.f32 %v553, 0.01
        %v606 = vmul.f32 %v558, 0.01
        %v607 = vmul.f32 %v561, 0.01
        %v608 = vmul.f32 %v566, 0.01
        %v609 = vmul.f32 %v569, 0.01
        %v610 = vmul.f32 %v574, 0.01
        %v611 = vmul.f32 %v577, 0.01
        %v612 = vsel %vm580, %v518, %v596
        %v613 = vsel %vm581, %v521, %v597
        %v614 = vsel %vm582, %v526, %v598
        %v615 = vsel %vm583, %v529, %v599
        %v616 = vsel %vm584, %v534, %v600
        %v617 = vsel %vm585, %v537, %v601
        %v618 = vsel %vm586, %v542, %v602
        %v619 = vsel %vm587, %v545, %v603
        %v620 = vsel %vm588, %v550, %v604
        %v621 = vsel %vm589, %v553, %v605
        %v622 = vsel %vm590, %v558, %v606
        %v623 = vsel %vm591, %v561, %v607
        %v624 = vsel %vm592, %v566, %v608
        %v625 = vsel %vm593, %v569, %v609
        %v626 = vsel %vm594, %v574, %v610
        %v627 = vsel %vm595, %v577, %v611
        %v628 = vld [vmem:[%s3] sm:$0xf]
        %v629 = vld [vmem:[%s3 + $0x4] sm:$0xf]
        %v630 = vld [vmem:[%s3 + $0x8] sm:$0xf]
        %v631 = vld [vmem:[%s3 + $0xc] sm:$0xf]
        %v632 = vld [vmem:[%s3 + $0x10] sm:$0xf]
        %v633 = vld [vmem:[%s3 + $0x14] sm:$0xf]
        %v634 = vld [vmem:[%s3 + $0x18] sm:$0xf]
        %v635 = vld [vmem:[%s3 + $0x1c] sm:$0xf]
        %v636 = vld [vmem:[%s3 + $0x20] sm:$0xf]
        %v637 = vld [vmem:[%s3 + $0x24] sm:$0xf]
        %v638 = vld [vmem:[%s3 + $0x28] sm:$0xf]
        %v639 = vld [vmem:[%s3 + $0x2c] sm:$0xf]
        %v640 = vld [vmem:[%s3 + $0x30] sm:$0xf]
        %v641 = vld [vmem:[%s3 + $0x34] sm:$0xf]
        %v642 = vld [vmem:[%s3 + $0x38] sm:$0xf]
        %v643 = vld [vmem:[%s3 + $0x3c] sm:$0xf]
        %v644 = vld [vmem:[%s3 + $0x40] sm:$0xf]
        %v645 = vld [vmem:[%s3 + $0x44] sm:$0xf]
        %v646 = vld [vmem:[%s3 + $0x48] sm:$0xf]
        %v647 = vld [vmem:[%s3 + $0x4c] sm:$0xf]
        %v648 = vld [vmem:[%s3 + $0x50] sm:$0xf]
        %v649 = vld [vmem:[%s3 + $0x54] sm:$0xf]
        %v650 = vld [vmem:[%s3 + $0x58] sm:$0xf]
        %v651 = vld [vmem:[%s3 + $0x5c] sm:$0xf]
        %v652 = vld [vmem:[%s3 + $0x60] sm:$0xf]
        %v653 = vld [vmem:[%s3 + $0x64] sm:$0xf]
        %v654 = vld [vmem:[%s3 + $0x68] sm:$0xf]
        %v655 = vld [vmem:[%s3 + $0x6c] sm:$0xf]
        %v656 = vld [vmem:[%s3 + $0x70] sm:$0xf]
        %v657 = vld [vmem:[%s3 + $0x74] sm:$0xf]
        %v658 = vld [vmem:[%s3 + $0x78] sm:$0xf]
        %v659 = vld [vmem:[%s3 + $0x7c] sm:$0xf]
        %v660 = vpack.c.bf16 %v613, %v612
        %v661 = vpack.c.bf16 %v615, %v614
        %v662 = vpack.c.bf16 %v617, %v616
        %v663 = vpack.c.bf16 %v619, %v618
        %v664 = vpack.c.bf16 %v621, %v620
        %v665 = vpack.c.bf16 %v623, %v622
        %v666 = vpack.c.bf16 %v625, %v624
        %v667 = vpack.c.bf16 %v627, %v626
        %v668 = vld [vmem:[%s4] sm:$0xff]
        %v669 = vld [vmem:[%s4 + $0x8] sm:$0xff]
        %v670 = vld [vmem:[%s4 + $0x10] sm:$0xff]
        %v671 = vld [vmem:[%s4 + $0x18] sm:$0xff]
        %v672 = vld [vmem:[%s4 + $0x20] sm:$0xff]
        %v673 = vld [vmem:[%s4 + $0x28] sm:$0xff]
        %v674 = vld [vmem:[%s4 + $0x30] sm:$0xff]
        %v675 = vld [vmem:[%s4 + $0x38] sm:$0xff]
        %v676 = vld [vmem:[%s4 + $0x40] sm:$0xff]
        %v677 = vld [vmem:[%s4 + $0x48] sm:$0xff]
        %v678 = vld [vmem:[%s4 + $0x50] sm:$0xff]
        %v679 = vld [vmem:[%s4 + $0x58] sm:$0xff]
        %v680 = vld [vmem:[%s4 + $0x60] sm:$0xff]
        %v681 = vld [vmem:[%s4 + $0x68] sm:$0xff]
        %v682 = vld [vmem:[%s4 + $0x70] sm:$0xff]
        %v683 = vld [vmem:[%s4 + $0x78] sm:$0xff]
        %v684 = vld [vmem:[%s4 + $0x80] sm:$0xff]
        %v685 = vld [vmem:[%s4 + $0x88] sm:$0xff]
        %v686 = vld [vmem:[%s4 + $0x90] sm:$0xff]
        %v687 = vld [vmem:[%s4 + $0x98] sm:$0xff]
        %v688 = vld [vmem:[%s4 + $0xa0] sm:$0xff]
        %v689 = vld [vmem:[%s4 + $0xa8] sm:$0xff]
        %v690 = vld [vmem:[%s4 + $0xb0] sm:$0xff]
        %v691 = vld [vmem:[%s4 + $0xb8] sm:$0xff]
        %v692 = vld [vmem:[%s4 + $0xc0] sm:$0xff]
        %v693 = vld [vmem:[%s4 + $0xc8] sm:$0xff]
        %v694 = vld [vmem:[%s4 + $0xd0] sm:$0xff]
        %v695 = vld [vmem:[%s4 + $0xd8] sm:$0xff]
        %v696 = vld [vmem:[%s4 + $0xe0] sm:$0xff]
        %v697 = vld [vmem:[%s4 + $0xe8] sm:$0xff]
        %v698 = vld [vmem:[%s4 + $0xf0] sm:$0xff]
        %v699 = vld [vmem:[%s4 + $0xf8] sm:$0xff]
        %701 = vset.pattern.permute.xlu0 0
        %702 = vperm.xlu0 %701, %v668
        %v703 = vpop.permute.xlu0 %702
        %706 = vset.pattern.permute.xlu0 0
        %707 = vperm.xlu0 %706, %v669
        %v708 = vpop.permute.xlu0 %707
        %711 = vset.pattern.permute.xlu0 0
        %712 = vperm.xlu0 %711, %v670
        %v713 = vpop.permute.xlu0 %712
        %716 = vset.pattern.permute.xlu0 0
        %717 = vperm.xlu0 %716, %v671
        %v718 = vpop.permute.xlu0 %717
        %721 = vset.pattern.permute.xlu0 0
        %722 = vperm.xlu0 %721, %v672
        %v723 = vpop.permute.xlu0 %722
        %726 = vset.pattern.permute.xlu0 0
        %727 = vperm.xlu0 %726, %v673
        %v728 = vpop.permute.xlu0 %727
        %731 = vset.pattern.permute.xlu0 0
        %732 = vperm.xlu0 %731, %v674
        %v733 = vpop.permute.xlu0 %732
        %736 = vset.pattern.permute.xlu0 0
        %737 = vperm.xlu0 %736, %v675
        %v738 = vpop.permute.xlu0 %737
        %741 = vset.pattern.permute.xlu0 0
        %742 = vperm.xlu0 %741, %v676
        %v743 = vpop.permute.xlu0 %742
        %746 = vset.pattern.permute.xlu0 0
        %747 = vperm.xlu0 %746, %v677
        %v748 = vpop.permute.xlu0 %747
        %751 = vset.pattern.permute.xlu0 0
        %752 = vperm.xlu0 %751, %v678
        %v753 = vpop.permute.xlu0 %752
        %756 = vset.pattern.permute.xlu0 0
        %757 = vperm.xlu0 %756, %v679
        %v758 = vpop.permute.xlu0 %757
        %761 = vset.pattern.permute.xlu0 0
        %762 = vperm.xlu0 %761, %v680
        %v763 = vpop.permute.xlu0 %762
        %766 = vset.pattern.permute.xlu0 0
        %767 = vperm.xlu0 %766, %v681
        %v768 = vpop.permute.xlu0 %767
        %771 = vset.pattern.permute.xlu0 0
        %772 = vperm.xlu0 %771, %v682
        %v773 = vpop.permute.xlu0 %772
        %776 = vset.pattern.permute.xlu0 0
        %777 = vperm.xlu0 %776, %v683
        %v778 = vpop.permute.xlu0 %777
        %781 = vset.pattern.permute.xlu0 0
        %782 = vperm.xlu0 %781, %v684
        %v783 = vpop.permute.xlu0 %782
        %786 = vset.pattern.permute.xlu0 0
        %787 = vperm.xlu0 %786, %v685
        %v788 = vpop.permute.xlu0 %787
        %791 = vset.pattern.permute.xlu0 0
        %792 = vperm.xlu0 %791, %v686
        %v793 = vpop.permute.xlu0 %792
        %796 = vset.pattern.permute.xlu0 0
        %797 = vperm.xlu0 %796, %v687
        %v798 = vpop.permute.xlu0 %797
        %801 = vset.pattern.permute.xlu0 0
        %802 = vperm.xlu0 %801, %v688
        %v803 = vpop.permute.xlu0 %802
        %806 = vset.pattern.permute.xlu0 0
        %807 = vperm.xlu0 %806, %v689
        %v808 = vpop.permute.xlu0 %807
        %811 = vset.pattern.permute.xlu0 0
        %812 = vperm.xlu0 %811, %v690
        %v813 = vpop.permute.xlu0 %812
        %816 = vset.pattern.permute.xlu0 0
        %817 = vperm.xlu0 %816, %v691
        %v818 = vpop.permute.xlu0 %817
        %821 = vset.pattern.permute.xlu0 0
        %822 = vperm.xlu0 %821, %v692
        %v823 = vpop.permute.xlu0 %822
        %826 = vset.pattern.permute.xlu0 0
        %827 = vperm.xlu0 %826, %v693
        %v828 = vpop.permute.xlu0 %827
        %831 = vset.pattern.permute.xlu0 0
        %832 = vperm.xlu0 %831, %v694
        %v833 = vpop.permute.xlu0 %832
        %836 = vset.pattern.permute.xlu0 0
        %837 = vperm.xlu0 %836, %v695
        %v838 = vpop.permute.xlu0 %837
        %841 = vset.pattern.permute.xlu0 0
        %842 = vperm.xlu0 %841, %v696
        %v843 = vpop.permute.xlu0 %842
        %846 = vset.pattern.permute.xlu0 0
        %847 = vperm.xlu0 %846, %v697
        %v848 = vpop.permute.xlu0 %847
        %851 = vset.pattern.permute.xlu0 0
        %852 = vperm.xlu0 %851, %v698
        %v853 = vpop.permute.xlu0 %852
        %856 = vset.pattern.permute.xlu0 0
        %857 = vperm.xlu0 %856, %v699
        %v858 = vpop.permute.xlu0 %857
        %v892 = vunpack.c.l.b16 %v628
        %v893 = vunpack.c.l.b16 %v629
        %v894 = vunpack.c.l.b16 %v630
        %v895 = vunpack.c.l.b16 %v631
        %v896 = vunpack.c.l.b16 %v632
        %v897 = vunpack.c.l.b16 %v633
        %v898 = vunpack.c.l.b16 %v634
        %v899 = vunpack.c.l.b16 %v635
        %v900 = vunpack.c.l.b16 %v636
        %v901 = vunpack.c.l.b16 %v637
        %v902 = vunpack.c.l.b16 %v638
        %v903 = vunpack.c.l.b16 %v639
        %v904 = vunpack.c.l.b16 %v640
        %v905 = vunpack.c.l.b16 %v641
        %v906 = vunpack.c.l.b16 %v642
        %v907 = vunpack.c.l.b16 %v643
        %v908 = vunpack.c.l.b16 %v644
        %v909 = vunpack.c.l.b16 %v645
        %v910 = vunpack.c.l.b16 %v646
        %v911 = vunpack.c.l.b16 %v647
        %v912 = vunpack.c.l.b16 %v648
        %v913 = vunpack.c.l.b16 %v649
        %v914 = vunpack.c.l.b16 %v650
        %v915 = vunpack.c.l.b16 %v651
        %v916 = vunpack.c.l.b16 %v652
        %v917 = vunpack.c.l.b16 %v653
        %v918 = vunpack.c.l.b16 %v654
        %v919 = vunpack.c.l.b16 %v655
        %v920 = vunpack.c.l.b16 %v656
        %v921 = vunpack.c.l.b16 %v657
        %v922 = vunpack.c.l.b16 %v658
        %v923 = vunpack.c.l.b16 %v659
        %v924 = vpack.c.b16 %v893, %v892
        %v925 = vpack.c.b16 %v895, %v894
        %v926 = vpack.c.b16 %v897, %v896
        %v927 = vpack.c.b16 %v899, %v898
        %v928 = vpack.c.b16 %v901, %v900
        %v929 = vpack.c.b16 %v903, %v902
        %v930 = vpack.c.b16 %v905, %v904
        %v931 = vpack.c.b16 %v907, %v906
        %v932 = vpack.c.b16 %v909, %v908
        %v933 = vpack.c.b16 %v911, %v910
        %v934 = vpack.c.b16 %v913, %v912
        %v935 = vpack.c.b16 %v915, %v914
        %v936 = vpack.c.b16 %v917, %v916
        %v937 = vpack.c.b16 %v919, %v918
        %v938 = vpack.c.b16 %v921, %v920
        %v939 = vpack.c.b16 %v923, %v922
        %956 = vmatprep.subr.bf16.mxu0 0
        %957 = vmatpush1.bf16.msra.mxu0 %v660
        %958 = vmatprep.subr.bf16.mxu0 0
        %959 = vmatpush1.bf16.msra.mxu0 %v661
        %960 = vmatprep.subr.bf16.mxu0 0
        %961 = vmatpush1.bf16.msra.mxu0 %v662
        %962 = vmatprep.subr.bf16.mxu0 0
        %963 = vmatpush1.bf16.msra.mxu0 %v663
        %964 = vmatprep.subr.bf16.mxu0 0
        %965 = vmatpush1.bf16.msra.mxu0 %v664
        %966 = vmatprep.subr.bf16.mxu0 0
        %967 = vmatpush1.bf16.msra.mxu0 %v665
        %968 = vmatprep.subr.bf16.mxu0 0
        %969 = vmatpush1.bf16.msra.mxu0 %v666
        %970 = vmatprep.subr.bf16.mxu0 0
        %971 = vmatpush1.bf16.msra.mxu0 %v667
        %972 = vmatprep.subr.bf16.mxu0 0
        %973 = vmatpush1.bf16.msra.mxu0 0
        %974 = vmatprep.subr.bf16.mxu0 0
        %975 = vmatpush1.bf16.msra.mxu0 0
        %976 = vmatprep.subr.bf16.mxu0 0
        %977 = vmatpush1.bf16.msra.mxu0 0
        %978 = vmatprep.subr.bf16.mxu0 0
        %979 = vmatpush1.bf16.msra.mxu0 0
        %980 = vmatprep.subr.bf16.mxu0 0
        %981 = vmatpush1.bf16.msra.mxu0 0
        %982 = vmatprep.subr.bf16.mxu0 0
        %983 = vmatpush1.bf16.msra.mxu0 0
        %984 = vmatprep.subr.bf16.mxu0 0
        %985 = vmatpush1.bf16.msra.mxu0 0
        %986 = vmatprep.subr.bf16.mxu0 0
        %987 = vmatpush1.bf16.msra.mxu0 0
        %988 = vmatprep.mubr.bf16.mxu0 0
        %989 = vmatmul.mubr.bf16.gmra.mrb[0].mxu0 %v924
        %v990 = vpop.f32.mrb[0].mxu0
        %v991 = vadd.f32 %v703, %v990
        %v992 = vpop.f32.mrb[0].mxu0
        %v993 = vpop.f32.mrb[0].mxu0
        %v994 = vadd.f32 %v708, %v993
        %v995 = vpop.f32.mrb[0].mxu0
        %996 = vmatprep.mubr.bf16.mxu0 0
        %997 = vmatmul.mubr.bf16.gmra.mrb[0].mxu0 %v925
        %v998 = vpop.f32.mrb[0].mxu0
        %v999 = vadd.f32 %v713, %v998
        %v1000 = vpop.f32.mrb[0].mxu0
        %v1001 = vpop.f32.mrb[0].mxu0
        %v1002 = vadd.f32 %v718, %v1001
        %v1003 = vpop.f32.mrb[0].mxu0
        %1004 = vmatprep.mubr.bf16.mxu0 0
        %1005 = vmatmul.mubr.bf16.gmra.mrb[0].mxu0 %v926
        %v1006 = vpop.f32.mrb[0].mxu0
        %v1007 = vadd.f32 %v723, %v1006
        %v1008 = vpop.f32.mrb[0].mxu0
        %v1009 = vpop.f32.mrb[0].mxu0
        %v1010 = vadd.f32 %v728, %v1009
        %v1011 = vpop.f32.mrb[0].mxu0
        %1012 = vmatprep.mubr.bf16.mxu0 0
        %1013 = vmatmul.mubr.bf16.gmra.mrb[0].mxu0 %v927
        %v1014 = vpop.f32.mrb[0].mxu0
        %v1015 = vadd.f32 %v733, %v1014
        %v1016 = vpop.f32.mrb[0].mxu0
        %v1017 = vpop.f32.mrb[0].mxu0
        %v1018 = vadd.f32 %v738, %v1017
        %v1019 = vpop.f32.mrb[0].mxu0
        %1020 = vmatprep.mubr.bf16.mxu0 0
        %1021 = vmatmul.mubr.bf16.gmra.mrb[0].mxu0 %v928
        %v1022 = vpop.f32.mrb[0].mxu0
        %v1023 = vadd.f32 %v743, %v1022
        %v1024 = vpop.f32.mrb[0].mxu0
        %v1025 = vpop.f32.mrb[0].mxu0
        %v1026 = vadd.f32 %v748, %v1025
        %v1027 = vpop.f32.mrb[0].mxu0
        %1028 = vmatprep.mubr.bf16.mxu0 0
        %1029 = vmatmul.mubr.bf16.gmra.mrb[0].mxu0 %v929
        %v1030 = vpop.f32.mrb[0].mxu0
        %v1031 = vadd.f32 %v753, %v1030
        %v1032 = vpop.f32.mrb[0].mxu0
        %v1033 = vpop.f32.mrb[0].mxu0
        %v1034 = vadd.f32 %v758, %v1033
        %v1035 = vpop.f32.mrb[0].mxu0
        %1036 = vmatprep.mubr.bf16.mxu0 0
        %1037 = vmatmul.mubr.bf16.gmra.mrb[0].mxu0 %v930
        %v1038 = vpop.f32.mrb[0].mxu0
        %v1039 = vadd.f32 %v763, %v1038
        %v1040 = vpop.f32.mrb[0].mxu0
        %v1041 = vpop.f32.mrb[0].mxu0
        %v1042 = vadd.f32 %v768, %v1041
        %v1043 = vpop.f32.mrb[0].mxu0
        %1044 = vmatprep.mubr.bf16.mxu0 0
        %1045 = vmatmul.mubr.bf16.gmra.mrb[0].mxu0 %v931
        %v1046 = vpop.f32.mrb[0].mxu0
        %v1047 = vadd.f32 %v773, %v1046
        %v1048 = vpop.f32.mrb[0].mxu0
        %v1049 = vpop.f32.mrb[0].mxu0
        %v1050 = vadd.f32 %v778, %v1049
        %v1051 = vpop.f32.mrb[0].mxu0
        %1052 = vmatprep.mubr.bf16.mxu0 0
        %1053 = vmatmul.mubr.bf16.gmra.mrb[0].mxu0 %v932
        %v1054 = vpop.f32.mrb[0].mxu0
        %v1055 = vadd.f32 %v783, %v1054
        %v1056 = vpop.f32.mrb[0].mxu0
        %v1057 = vpop.f32.mrb[0].mxu0
        %v1058 = vadd.f32 %v788, %v1057
        %v1059 = vpop.f32.mrb[0].mxu0
        %1060 = vmatprep.mubr.bf16.mxu0 0
        %1061 = vmatmul.mubr.bf16.gmra.mrb[0].mxu0 %v933
        %v1062 = vpop.f32.mrb[0].mxu0
        %v1063 = vadd.f32 %v793, %v1062
        %v1064 = vpop.f32.mrb[0].mxu0
        %v1065 = vpop.f32.mrb[0].mxu0
        %v1066 = vadd.f32 %v798, %v1065
        %v1067 = vpop.f32.mrb[0].mxu0
        %1068 = vmatprep.mubr.bf16.mxu0 0
        %1069 = vmatmul.mubr.bf16.gmra.mrb[0].mxu0 %v934
        %v1070 = vpop.f32.mrb[0].mxu0
        %v1071 = vadd.f32 %v803, %v1070
        %v1072 = vpop.f32.mrb[0].mxu0
        %v1073 = vpop.f32.mrb[0].mxu0
        %v1074 = vadd.f32 %v808, %v1073
        %v1075 = vpop.f32.mrb[0].mxu0
        %1076 = vmatprep.mubr.bf16.mxu0 0
        %1077 = vmatmul.mubr.bf16.gmra.mrb[0].mxu0 %v935
        %v1078 = vpop.f32.mrb[0].mxu0
        %v1079 = vadd.f32 %v813, %v1078
        %v1080 = vpop.f32.mrb[0].mxu0
        %v1081 = vpop.f32.mrb[0].mxu0
        %v1082 = vadd.f32 %v818, %v1081
        %v1083 = vpop.f32.mrb[0].mxu0
        %1084 = vmatprep.mubr.bf16.mxu0 0
        %1085 = vmatmul.mubr.bf16.gmra.mrb[0].mxu0 %v936
        %v1086 = vpop.f32.mrb[0].mxu0
        %v1087 = vadd.f32 %v823, %v1086
        %v1088 = vpop.f32.mrb[0].mxu0
        %v1089 = vpop.f32.mrb[0].mxu0
        %v1090 = vadd.f32 %v828, %v1089
        %v1091 = vpop.f32.mrb[0].mxu0
        %1092 = vmatprep.mubr.bf16.mxu0 0
        %1093 = vmatmul.mubr.bf16.gmra.mrb[0].mxu0 %v937
        %v1094 = vpop.f32.mrb[0].mxu0
        %v1095 = vadd.f32 %v833, %v1094
        %v1096 = vpop.f32.mrb[0].mxu0
        %v1097 = vpop.f32.mrb[0].mxu0
        %v1098 = vadd.f32 %v838, %v1097
        %v1099 = vpop.f32.mrb[0].mxu0
        %1100 = vmatprep.mubr.bf16.mxu0 0
        %1101 = vmatmul.mubr.bf16.gmra.mrb[0].mxu0 %v938
        %v1102 = vpop.f32.mrb[0].mxu0
        %v1103 = vadd.f32 %v843, %v1102
        %v1104 = vpop.f32.mrb[0].mxu0
        %v1105 = vpop.f32.mrb[0].mxu0
        %v1106 = vadd.f32 %v848, %v1105
        %v1107 = vpop.f32.mrb[0].mxu0
        %1108 = vmatprep.mubr.bf16.mxu0 0
        %1109 = vmatmul.mubr.bf16.gmra.mrb[0].mxu0 %v939
        %v1110 = vpop.f32.mrb[0].mxu0
        %v1111 = vadd.f32 %v853, %v1110
        %v1112 = vpop.f32.mrb[0].mxu0
        %v1113 = vpop.f32.mrb[0].mxu0
        %v1114 = vadd.f32 %v858, %v1113
        %v1115 = vpop.f32.mrb[0].mxu0
        %1116 = vdwg.mxu0
        %vm1117 = vcmp.ge.f32.partialorder %v991, 0.0
        %vm1118 = vcmp.ge.f32.partialorder %v994, 0.0
        %vm1119 = vcmp.ge.f32.partialorder %v999, 0.0
        %vm1120 = vcmp.ge.f32.partialorder %v1002, 0.0
        %vm1121 = vcmp.ge.f32.partialorder %v1007, 0.0
        %vm1122 = vcmp.ge.f32.partialorder %v1010, 0.0
        %vm1123 = vcmp.ge.f32.partialorder %v1015, 0.0
        %vm1124 = vcmp.ge.f32.partialorder %v1018, 0.0
        %vm1125 = vcmp.ge.f32.partialorder %v1023, 0.0
        %vm1126 = vcmp.ge.f32.partialorder %v1026, 0.0
        %vm1127 = vcmp.ge.f32.partialorder %v1031, 0.0
        %vm1128 = vcmp.ge.f32.partialorder %v1034, 0.0
        %vm1129 = vcmp.ge.f32.partialorder %v1039, 0.0
        %vm1130 = vcmp.ge.f32.partialorder %v1042, 0.0
        %vm1131 = vcmp.ge.f32.partialorder %v1047, 0.0
        %vm1132 = vcmp.ge.f32.partialorder %v1050, 0.0
        %vm1133 = vcmp.ge.f32.partialorder %v1055, 0.0
        %vm1134 = vcmp.ge.f32.partialorder %v1058, 0.0
        %vm1135 = vcmp.ge.f32.partialorder %v1063, 0.0
        %vm1136 = vcmp.ge.f32.partialorder %v1066, 0.0
        %vm1137 = vcmp.ge.f32.partialorder %v1071, 0.0
        %vm1138 = vcmp.ge.f32.partialorder %v1074, 0.0
        %vm1139 = vcmp.ge.f32.partialorder %v1079, 0.0
        %vm1140 = vcmp.ge.f32.partialorder %v1082, 0.0
        %vm1141 = vcmp.ge.f32.partialorder %v1087, 0.0
        %vm1142 = vcmp.ge.f32.partialorder %v1090, 0.0
        %vm1143 = vcmp.ge.f32.partialorder %v1095, 0.0
        %vm1144 = vcmp.ge.f32.partialorder %v1098, 0.0
        %vm1145 = vcmp.ge.f32.partialorder %v1103, 0.0
        %vm1146 = vcmp.ge.f32.partialorder %v1106, 0.0
        %vm1147 = vcmp.ge.f32.partialorder %v1111, 0.0
        %vm1148 = vcmp.ge.f32.partialorder %v1114, 0.0
        %v1149 = vmul.f32 %v991, 0.01
        %v1150 = vmul.f32 %v994, 0.01
        %v1151 = vmul.f32 %v999, 0.01
        %v1152 = vmul.f32 %v1002, 0.01
        %v1153 = vmul.f32 %v1007, 0.01
        %v1154 = vmul.f32 %v1010, 0.01
        %v1155 = vmul.f32 %v1015, 0.01
        %v1156 = vmul.f32 %v1018, 0.01
        %v1157 = vmul.f32 %v1023, 0.01
        %v1158 = vmul.f32 %v1026, 0.01
        %v1159 = vmul.f32 %v1031, 0.01
        %v1160 = vmul.f32 %v1034, 0.01
        %v1161 = vmul.f32 %v1039, 0.01
        %v1162 = vmul.f32 %v1042, 0.01
        %v1163 = vmul.f32 %v1047, 0.01
        %v1164 = vmul.f32 %v1050, 0.01
        %v1165 = vmul.f32 %v1055, 0.01
        %v1166 = vmul.f32 %v1058, 0.01
        %v1167 = vmul.f32 %v1063, 0.01
        %v1168 = vmul.f32 %v1066, 0.01
        %v1169 = vmul.f32 %v1071, 0.01
        %v1170 = vmul.f32 %v1074, 0.01
        %v1171 = vmul.f32 %v1079, 0.01
        %v1172 = vmul.f32 %v1082, 0.01
        %v1173 = vmul.f32 %v1087, 0.01
        %v1174 = vmul.f32 %v1090, 0.01
        %v1175 = vmul.f32 %v1095, 0.01
        %v1176 = vmul.f32 %v1098, 0.01
        %v1177 = vmul.f32 %v1103, 0.01
        %v1178 = vmul.f32 %v1106, 0.01
        %v1179 = vmul.f32 %v1111, 0.01
        %v1180 = vmul.f32 %v1114, 0.01
        %v1181 = vsel %vm1117, %v991, %v1149
        %v1182 = vsel %vm1118, %v994, %v1150
        %v1183 = vsel %vm1119, %v999, %v1151
        %v1184 = vsel %vm1120, %v1002, %v1152
        %v1185 = vsel %vm1121, %v1007, %v1153
        %v1186 = vsel %vm1122, %v1010, %v1154
        %v1187 = vsel %vm1123, %v1015, %v1155
        %v1188 = vsel %vm1124, %v1018, %v1156
        %v1189 = vsel %vm1125, %v1023, %v1157
        %v1190 = vsel %vm1126, %v1026, %v1158
        %v1191 = vsel %vm1127, %v1031, %v1159
        %v1192 = vsel %vm1128, %v1034, %v1160
        %v1193 = vsel %vm1129, %v1039, %v1161
        %v1194 = vsel %vm1130, %v1042, %v1162
        %v1195 = vsel %vm1131, %v1047, %v1163
        %v1196 = vsel %vm1132, %v1050, %v1164
        %v1197 = vsel %vm1133, %v1055, %v1165
        %v1198 = vsel %vm1134, %v1058, %v1166
        %v1199 = vsel %vm1135, %v1063, %v1167
        %v1200 = vsel %vm1136, %v1066, %v1168
        %v1201 = vsel %vm1137, %v1071, %v1169
        %v1202 = vsel %vm1138, %v1074, %v1170
        %v1203 = vsel %vm1139, %v1079, %v1171
        %v1204 = vsel %vm1140, %v1082, %v1172
        %v1205 = vsel %vm1141, %v1087, %v1173
        %v1206 = vsel %vm1142, %v1090, %v1174
        %v1207 = vsel %vm1143, %v1095, %v1175
        %v1208 = vsel %vm1144, %v1098, %v1176
        %v1209 = vsel %vm1145, %v1103, %v1177
        %v1210 = vsel %vm1146, %v1106, %v1178
        %v1211 = vsel %vm1147, %v1111, %v1179
        %v1212 = vsel %vm1148, %v1114, %v1180
        %v1213 = vld [vmem:[%s5] sm:$0x3]
        %v1214 = vpack.c.bf16 %v1182, %v1181
        %v1215 = vpack.c.bf16 %v1184, %v1183
        %v1216 = vpack.c.bf16 %v1186, %v1185
        %v1217 = vpack.c.bf16 %v1188, %v1187
        %v1218 = vpack.c.bf16 %v1190, %v1189
        %v1219 = vpack.c.bf16 %v1192, %v1191
        %v1220 = vpack.c.bf16 %v1194, %v1193
        %v1221 = vpack.c.bf16 %v1196, %v1195
        %v1222 = vpack.c.bf16 %v1198, %v1197
        %v1223 = vpack.c.bf16 %v1200, %v1199
        %v1224 = vpack.c.bf16 %v1202, %v1201
        %v1225 = vpack.c.bf16 %v1204, %v1203
        %v1226 = vpack.c.bf16 %v1206, %v1205
        %v1227 = vpack.c.bf16 %v1208, %v1207
        %v1228 = vpack.c.bf16 %v1210, %v1209
        %v1229 = vpack.c.bf16 %v1212, %v1211
        %v1230 = vld [vmem:[%s6] sm:$0x3]
        %1232 = vset.pattern.permute.xlu0 0
        %1233 = vperm.xlu0 %1232, %v1230
        %v1234 = vpop.permute.xlu0 %1233
        %v1238 = vunpack.c.l.s4 1966171168
        %v1239 = vunpack.c.0.s8 %v1238
        %v1240 = vlaneseq
        %v1241 = vshrl.u32 %v1240, 7
        %v1242 = vsub.s32 %v1239, %v1241
        %v1243 = vrot.slane %v1213, %v1242
        %v1244 = vcombine.high %v1243, %v1243
        %v1246 = vunpack.c.l.s4 1966171168
        %v1247 = vunpack.c.0.s8 %v1246
        %v1248 = vlaneseq
        %v1249 = vshrl.u32 %v1248, 7
        %v1250 = vsub.s32 %v1247, %v1249
        %v1251 = vrot.slane %v1243, %v1250
        %v1253 = vunpack.c.l.s4 1966171168
        %v1254 = vunpack.c.0.s8 %v1253
        %v1255 = vlaneseq
        %v1256 = vshrl.u32 %v1255, 7
        %v1257 = vsub.s32 %v1254, %v1256
        %v1258 = vrot.slane %v1244, %v1257
        %1261 = vmatprep.subr.bf16.mxu0 0
        %1262 = vmatpush1.bf16.msra.mxu0 %v1214
        %1263 = vmatprep.subr.bf16.mxu0 0
        %1264 = vmatpush1.bf16.msra.mxu0 %v1215
        %1265 = vmatprep.subr.bf16.mxu0 0
        %1266 = vmatpush1.bf16.msra.mxu0 %v1216
        %1267 = vmatprep.subr.bf16.mxu0 0
        %1268 = vmatpush1.bf16.msra.mxu0 %v1217
        %1269 = vmatprep.subr.bf16.mxu0 0
        %1270 = vmatpush1.bf16.msra.mxu0 %v1218
        %1271 = vmatprep.subr.bf16.mxu0 0
        %1272 = vmatpush1.bf16.msra.mxu0 %v1219
        %1273 = vmatprep.subr.bf16.mxu0 0
        %1274 = vmatpush1.bf16.msra.mxu0 %v1220
        %1275 = vmatprep.subr.bf16.mxu0 0
        %1276 = vmatpush1.bf16.msra.mxu0 %v1221
        %1277 = vmatprep.subr.bf16.mxu0 0
        %1278 = vmatpush1.bf16.msra.mxu0 %v1222
        %1279 = vmatprep.subr.bf16.mxu0 0
        %1280 = vmatpush1.bf16.msra.mxu0 %v1223
        %1281 = vmatprep.subr.bf16.mxu0 0
        %1282 = vmatpush1.bf16.msra.mxu0 %v1224
        %1283 = vmatprep.subr.bf16.mxu0 0
        %1284 = vmatpush1.bf16.msra.mxu0 %v1225
        %1285 = vmatprep.subr.bf16.mxu0 0
        %1286 = vmatpush1.bf16.msra.mxu0 %v1226
        %1287 = vmatprep.subr.bf16.mxu0 0
        %1288 = vmatpush1.bf16.msra.mxu0 %v1227
        %1289 = vmatprep.subr.bf16.mxu0 0
        %1290 = vmatpush1.bf16.msra.mxu0 %v1228
        %1291 = vmatprep.subr.bf16.mxu0 0
        %1292 = vmatpush1.bf16.msra.mxu0 %v1229
        %1293 = vmatprep.mubr.bf16.mxu0 %v1258
        %1294 = vmatmul.mubr.bf16.gmra.mrb[0].mxu0 %v1251
        %v1295 = vpop.f32.mrb[0].mxu0
        %v1296 = vadd.f32 %v1234, %v1295
        %v1297 = vpop.f32.mrb[0].mxu0
        %v1298 = vpop.f32.mrb[0].mxu0
        %v1299 = vpop.f32.mrb[0].mxu0
        %1300 = vdwg.mxu0
        %vm1301 = vcmask 517120
        %1302 = vst.msk [vmem:[%s293] sm:$0x3] %vm1301, %v1296
        %s1303 = sand.u32 %s197, 1
        %s1304 = scalar_lea.sflag [#allocation3], %s1303
        %s1305 = sand.u32 %s197, 1
        %s1306 = smul.addr %s1305, 2
        %s1307 = scalar_lea.vmem [#allocation2], %s1306
        // Predicated region
        $region49: #{tpu_custom_call.1} parent=47 // pred_check
          %p1308 = pneg %p207
        $region50: #{tpu_custom_call.1} parent=47 // pred_check_branch
          %1310 = sbr.rel (%p1308) target = $region52
        $region51: #{tpu_custom_call.1} parent=47 // pred_region
          %s1312 = ssub.s32 32, 32
          %1313 = vsyncadd %s1304, %s1312
          %s1314 = sadd.s32 %s26, %s25
          %s1315 = smul.addr %s1314, 32
          %s1316 = scalar_lea.hbm %s7, %s1315
          %s1318 = sshll.u32 %s1307, 4
          %s1319 = int_to_ptr.vmem [resolvable:$true] %s1318
          %1321 = dma.vmem_to_hbm [thread:$0]  %s1319, 32, %s1316, %s1304
        $region52: #{tpu_custom_call.1} parent=47 // pred_fallthru
          _
      $region48: #{tpu_custom_call.1} parent=5 // pred_fallthru
        _
      %p1322 = scmp.le.s32.totalorder 2, %s16
      // Predicated region
      $region53: #{tpu_custom_call.1} parent=5 // pred_check
        %p1323 = pneg %p1322
      $region54: #{tpu_custom_call.1} parent=5 // pred_check_branch
        %1325 = sbr.rel (%p1323) target = $region56
      $region55: #{tpu_custom_call.1} parent=5 // pred_region
        %s1326 = ssub.s32 %s16, 2
        // Predicated region
        $region57: #{tpu_custom_call.1} parent=55 // pred_check
          %p1327 = pneg %p213
        $region58: #{tpu_custom_call.1} parent=55 // pred_check_branch
          %1329 = sbr.rel (%p1327) target = $region60
        $region59: #{tpu_custom_call.1} parent=55 // pred_region
          %s1330 = sand.u32 %s198, 1
          %s1331 = scalar_lea.sflag [#allocation3], %s1330
          %s1332 = sand.u32 %s198, 1
          %s1333 = smul.addr %s1332, 2
          %s1334 = scalar_lea.vmem [#allocation2], %s1333
          %1335 = dma.done %s1331, 32
        $region60: #{tpu_custom_call.1} parent=55 // pred_fallthru
          _
      $region56: #{tpu_custom_call.1} parent=5 // pred_fallthru
        _
    $region6: #{tpu_custom_call.1} parent=1 // loop_footer
      %s20 = sadd.s32 1, %s16
    $region7: #{tpu_custom_call.1} parent=1 // loop_footer_branch
      %15 = sbr.rel target = $region3
    $region8: #{tpu_custom_call.1} parent=1 // loop_exit
      _
    %1336 = vsyncpa [#allocation3], 1
    %s1337 = scalar_lea.sflag [#allocation3], 1
    %1338 = vsyncpa %s1337, 1

</llo_original>
